<compile_context>
chip_gen: v7x
topology: tpu7x:2x2x1
jax: 0.10.0
libtpu: 0.0.40
codegen_flags: <defaults>
</compile_context>

<pallas_src>
import functools

import jax
import jax.numpy as jnp
from jax.experimental import pallas as pl
from jax.experimental.pallas import tpu as pltpu

_LANE = 128                      # lane width: last-dim blocks must be 128-multiples
_INV_SQRT2 = 0.7071067811865476
_SQRT_2_OVER_PI = 0.7978845608028654


def _round_up(x, m):
    return (x + m - 1) // m * m


def _vmem_capacity_bytes():
    """Chip VMEM capacity (per TensorCore). Falls back to the smallest (v7x)."""
    try:
        return int(pltpu.get_tpu_info().vmem_capacity_bytes)
    except Exception:  # info query only — never hides kernel errors
        return 64 * 2 ** 20


def _gelu(h, approximate):
    if approximate:
        # tanh approximation -> EUP slot (near-free); torch GELU(approximate="tanh").
        return 0.5 * h * (1.0 + jnp.tanh(_SQRT_2_OVER_PI
                                         * (h + 0.044715 * h * h * h)))
    # Exact erf form: matches torch.nn.GELU() default.
    return 0.5 * h * (1.0 + jax.lax.erf(h * _INV_SQRT2))


# ----------------------------------------------------------------------------
# Kernels
# ----------------------------------------------------------------------------
def _resident_kernel(x_ref, w1_ref, b1_ref, w2_ref, b2_ref, o_ref, acc_ref, *,
                     hc, h_chunks, approximate):
    # Weights fully resident in VMEM; hidden dim processed in `hc`-wide chunks
    # so the live f32 intermediate is only (tm, hc) instead of (tm, H).
    x = x_ref[...]
    acc_ref[...] = jnp.zeros_like(acc_ref)

    # Static trip count -> fully unrolled straight-line code (equivalent to
    # lax.fori_loop(..., unroll=True)); accumulation goes through the VMEM
    # scratch ref so per-chunk intermediates die at the end of each chunk.
    for c in range(h_chunks):
        start = c * hc
        h = jnp.dot(x, w1_ref[:, pl.ds(start, hc)],
                    preferred_element_type=jnp.float32)
        h = h + b1_ref[:, pl.ds(start, hc)].astype(jnp.float32)
        h = _gelu(h, approximate)
        acc_ref[...] += jnp.dot(h.astype(w2_ref.dtype),
                                w2_ref[pl.ds(start, hc), :],
                                preferred_element_type=jnp.float32)

    o_ref[...] = (acc_ref[...]
                  + b2_ref[...].astype(jnp.float32)).astype(o_ref.dtype)


def _stream_kernel(x_ref, w1_ref, b1_ref, w2_ref, b2_ref, o_ref, acc_ref, *,
                   approximate):
    # Weight-streaming path: grid axis 1 walks hc-wide slabs of the hidden dim;
    # the f32 output accumulator persists in VMEM scratch across that axis.
    h_idx = pl.program_id(1)

    @pl.when(h_idx == 0)
    def _():
        acc_ref[...] = jnp.zeros_like(acc_ref)

    h = jnp.dot(x_ref[...], w1_ref[...], preferred_element_type=jnp.float32)
    h = h + b1_ref[...].astype(jnp.float32)
    h = _gelu(h, approximate)
    acc_ref[...] += jnp.dot(h.astype(w2_ref.dtype), w2_ref[...],
                            preferred_element_type=jnp.float32)

    @pl.when(h_idx == pl.num_programs(1) - 1)
    def _():
        o_ref[...] = (acc_ref[...]
                      + b2_ref[...].astype(jnp.float32)).astype(o_ref.dtype)


# ----------------------------------------------------------------------------
# Wrapper
# ----------------------------------------------------------------------------
def vision_feed_forward(x, w1, b1, w2, b2, *, tile_m=None, h_chunk=None,
                        gelu_approximate=False, param_dtype=None,
                        force_stream=False):
    """x: [..., E] -> [..., E].  w1: [E, H], b1: [H], w2: [H, E], b2: [E].

    Weights are the transposed torch parameters (w1 = linear1.weight.T, etc.).
    For v7x deployments pass bf16 weights (or param_dtype=jnp.bfloat16, cast
    once at init) so the resident path fits 64 MiB and the MXU runs full rate.
    """
    orig_shape = x.shape
    E = orig_shape[-1]
    H = w1.shape[1]
    assert w1.shape == (E, H) and w2.shape == (H, E)
    assert b1.shape == (H,) and b2.shape == (E,)

    if param_dtype is not None:
        w1 = w1.astype(param_dtype)
        w2 = w2.astype(param_dtype)

    x2d = x.reshape(-1, E)
    M = x2d.shape[0]
    if M == 0:
        return x

    cap = _vmem_capacity_bytes()
    budget = int(0.80 * cap)          # what we allow the kernel to plan for
    vmem_clamp = int(0.85 * cap)      # hard cap handed to the compiler

    # --- lane-dense channel padding (skipped entirely when already aligned;
    #     hoist to model init in production so the copy never runs per call).
    # TODO(synk): on v6e/v7x, padding tiny E/H up to 256 fills the 2x256^2 MXU better.
    E_pad = _round_up(E, _LANE)
    H_pad = _round_up(H, _LANE)

    xp = x2d if E_pad == E else jnp.pad(x2d, ((0, 0), (0, E_pad - E)))
    if E_pad == E and H_pad == H:
        w1p, b1p = w1, b1.reshape(1, H)
        w2p, b2p = w2, b2.reshape(1, E)
    else:
        w1p = jnp.pad(w1, ((0, E_pad - E), (0, H_pad - H)))
        b1p = jnp.pad(b1, ((0, H_pad - H),)).reshape(1, H_pad)
        w2p = jnp.pad(w2, ((0, H_pad - H), (0, E_pad - E)))
        b2p = jnp.pad(b2, ((0, E_pad - E),)).reshape(1, E_pad)

    x_bytes = jnp.dtype(xp.dtype).itemsize
    w_bytes = (w1p.size * w1p.dtype.itemsize + w2p.size * w2p.dtype.itemsize
               + b1p.size * b1p.dtype.itemsize + b2p.size * b2p.dtype.itemsize)

    # --- row tiling: no activation padding; the ragged last block is boundary-
    #     masked by Pallas (rows are independent, so this is safe).
    if tile_m is None:
        tile_m = 512 if cap >= 96 * 2 ** 20 else 256   # v5e/v6e : v7x
    tm = max(8, (int(tile_m) // 8) * 8)
    if M <= tm:
        tm = M                       # single block == full dim -> tiling rule ok
    grid_m = pl.cdiv(M, tm)
    if cap < 96 * 2 ** 20 and grid_m > 1 and grid_m % 2 == 1:
        # v7x: 2 TensorCores split the "parallel" M axis; keep grid_m even-ish.
        tm = max(8, _round_up(pl.cdiv(M, grid_m + 1), 8))
        grid_m = pl.cdiv(M, tm)

    # --- hidden-dim chunk width (shared by both paths); must divide H_pad.
    if h_chunk is None:
        h_chunk = 512
    hc = _LANE
    for cand in (1024, 512, 256, 128):
        if cand <= h_chunk and H_pad % cand == 0:
            hc = cand
            break
    h_chunks = H_pad // hc

    # --- VMEM footprint estimates (weights budgeted double-buffered).
    acc_bytes = tm * E_pad * 4                              # f32 accumulator scratch
    act_bytes = 2 * 2 * tm * E_pad * x_bytes                # x + out tiles, 2-deep
    inter_bytes = tm * hc * 6                               # f32 h + low-precision copy
    resident_need = 2 * w_bytes + act_bytes + acc_bytes + inter_bytes
    stream_need = (2 * hc * E_pad * (w1p.dtype.itemsize + w2p.dtype.itemsize) * 2
                   + 4 * (hc + E_pad) * b1p.dtype.itemsize
                   + act_bytes + acc_bytes + inter_bytes)

    use_resident = (not force_stream) and resident_need <= budget
    need = resident_need if use_resident else stream_need
    vmem_limit = int(min(max(int(1.5 * need), 32 * 2 ** 20), vmem_clamp))

    # Advisory cost for XLA's scheduler.
    cost = pl.CostEstimate(
        flops=4 * M * E_pad * H_pad,               # two matmuls, 2 flops/MAC
        transcendentals=M * H_pad,                 # one erf/tanh per hidden elem
        bytes_accessed=(xp.size * x_bytes + w_bytes + M * E_pad * x_bytes))

    out_shape = jax.ShapeDtypeStruct((M, E_pad), x.dtype)

    if use_resident:
        kernel = functools.partial(_resident_kernel, hc=hc, h_chunks=h_chunks,
                                   approximate=gelu_approximate)
        grid_spec = pltpu.PrefetchScalarGridSpec(
            num_scalar_prefetch=0,
            grid=(grid_m,),
            in_specs=[
                pl.BlockSpec((tm, E_pad), lambda i: (i, 0)),      # x tile
                pl.BlockSpec((E_pad, H_pad), lambda i: (0, 0)),   # w1 (resident)
                pl.BlockSpec((1, H_pad), lambda i: (0, 0)),       # b1
                pl.BlockSpec((H_pad, E_pad), lambda i: (0, 0)),   # w2 (resident)
                pl.BlockSpec((1, E_pad), lambda i: (0, 0)),       # b2
            ],
            out_specs=pl.BlockSpec((tm, E_pad), lambda i: (i, 0)),
            scratch_shapes=[pltpu.VMEM((tm, E_pad), jnp.float32)],
        )
        dims = ("parallel",)
    else:
        kernel = functools.partial(_stream_kernel, approximate=gelu_approximate)
        grid_spec = pltpu.PrefetchScalarGridSpec(
            num_scalar_prefetch=0,
            grid=(grid_m, h_chunks),
            in_specs=[
                pl.BlockSpec((tm, E_pad), lambda i, h: (i, 0)),   # x tile (h-invariant)
                pl.BlockSpec((E_pad, hc), lambda i, h: (0, h)),   # w1 slab
                pl.BlockSpec((1, hc), lambda i, h: (0, h)),       # b1 slab
                pl.BlockSpec((hc, E_pad), lambda i, h: (h, 0)),   # w2 slab
                pl.BlockSpec((1, E_pad), lambda i, h: (0, 0)),    # b2
            ],
            out_specs=pl.BlockSpec((tm, E_pad), lambda i, h: (i, 0)),
            scratch_shapes=[pltpu.VMEM((tm, E_pad), jnp.float32)],
        )
        dims = ("parallel", "arbitrary")

    out = pl.pallas_call(
        kernel,
        out_shape=out_shape,
        grid_spec=grid_spec,
        compiler_params=pltpu.CompilerParams(
            dimension_semantics=dims, vmem_limit_bytes=vmem_limit),
        cost_estimate=cost,
    )(xp, w1p, b1p, w2p, b2p)

    if E_pad != E:
        out = out[:, :E]
    return out.reshape(orig_shape)


def _reference(x, w1, b1, w2, b2):
    h = (jnp.dot(x.astype(jnp.float32), w1.astype(jnp.float32))
         + b1.astype(jnp.float32))
    h = jax.nn.gelu(h, approximate=False)
    out = jnp.dot(h, w2.astype(jnp.float32)) + b2.astype(jnp.float32)
    return out.astype(x.dtype)


if __name__ == "__main__":
    # Small shapes consistent with the module's forward: x is [B, S, E].
    B, S, E, H = 2, 8, 32, 64

    key = jax.random.PRNGKey(0)
    kx, kw1, kb1, kw2, kb2 = jax.random.split(key, 5)

    x = jax.random.normal(kx, (B, S, E), dtype=jnp.float32)
    # Parameter shapes from nn.Linear(E, H) / nn.Linear(H, E), stored
    # transposed for the x @ w convention.
    w1 = jax.random.normal(kw1, (E, H), dtype=jnp.float32) * 0.02
    b1 = jax.random.normal(kb1, (H,), dtype=jnp.float32) * 0.01
    w2 = jax.random.normal(kw2, (H, E), dtype=jnp.float32) * 0.02
    b2 = jax.random.normal(kb2, (E,), dtype=jnp.float32) * 0.01

    ref = _reference(x, w1, b1, w2, b2)

    # 1) Default path (weights resident, exact erf GELU -> matches nn.GELU()).
    out = jax.block_until_ready(vision_feed_forward(x, w1, b1, w2, b2))
    assert out.shape == (B, S, E)
    assert jnp.allclose(out, ref, atol=2e-5, rtol=2e-5), "resident path mismatch"

    # 2) Weight-streaming path (what v7x / large-H / f32-weight shapes select).
    out_s = jax.block_until_ready(
        vision_feed_forward(x, w1, b1, w2, b2, force_stream=True))
    assert jnp.allclose(out_s, ref, atol=2e-5, rtol=2e-5), "streaming path mismatch"

    # 3) Ragged M (no activation padding; boundary-masked last tile) + tanh GELU.
    x3 = jax.random.normal(kx, (3, 7, E), dtype=jnp.float32)
    ref3 = _reference(x3, w1, b1, w2, b2)
    out3 = jax.block_until_ready(
        vision_feed_forward(x3, w1, b1, w2, b2, tile_m=8, gelu_approximate=True))
    assert out3.shape == (3, 7, E)
    assert jnp.allclose(out3, ref3, atol=5e-3, rtol=5e-3), "ragged/tanh path mismatch"

    print("KERNEL_OK")
</pallas_src>

<mosaic_0001>
module attributes {stable_mosaic.version = 11 : i64} {
  func.func @_resident_kernel(%arg0: i32, %arg1: memref<16x128xf32, #tpu.memory_space<vmem>>, %arg2: memref<128x128xf32, #tpu.memory_space<vmem>>, %arg3: memref<1x128xf32, #tpu.memory_space<vmem>>, %arg4: memref<128x128xf32, #tpu.memory_space<vmem>>, %arg5: memref<1x128xf32, #tpu.memory_space<vmem>>, %arg6: memref<16x128xf32, #tpu.memory_space<vmem>>, %arg7: memref<16x128xf32, #tpu.memory_space<vmem>>) attributes {dimension_semantics = [#tpu.dimension_semantics<parallel>], iteration_bounds = array<i64: 1>, scalar_prefetch = 0 : i64, scratch_operands = 1 : i64, tpu.core_type = #tpu.core_type<tc>, window_params = [{transform_indices = @transform_0, window_bounds = array<i64: 16, 128>}, {pipeline_mode = #tpu.pipeline_mode<synchronous>, transform_indices = @transform_1, window_bounds = array<i64: 128, 128>}, {pipeline_mode = #tpu.pipeline_mode<synchronous>, transform_indices = @transform_2, window_bounds = array<i64: 1, 128>}, {pipeline_mode = #tpu.pipeline_mode<synchronous>, transform_indices = @transform_3, window_bounds = array<i64: 128, 128>}, {pipeline_mode = #tpu.pipeline_mode<synchronous>, transform_indices = @transform_4, window_bounds = array<i64: 1, 128>}, {transform_indices = @transform_5, window_bounds = array<i64: 16, 128>}]} {
    %c0 = arith.constant 0 : index
    %c0_0 = arith.constant 0 : index
    %0 = vector.load %arg1[%c0, %c0_0] : memref<16x128xf32, #tpu.memory_space<vmem>>, vector<16x128xf32>
    %cst = arith.constant 0.000000e+00 : f32
    %1 = vector.broadcast %cst : f32 to vector<16x128xf32>
    %c0_1 = arith.constant 0 : index
    %c0_2 = arith.constant 0 : index
    %2 = vector.load %arg7[%c0_1, %c0_2] : memref<16x128xf32, #tpu.memory_space<vmem>>, vector<16x128xf32>
    tpu.vector_store %arg7[%c0_1, %c0_2], %1 {strides = array<i32>} : memref<16x128xf32, #tpu.memory_space<vmem>>, vector<16x128xf32>,
    %c0_3 = arith.constant 0 : index
    %c0_4 = arith.constant 0 : index
    %3 = vector.load %arg2[%c0_3, %c0_4] : memref<128x128xf32, #tpu.memory_space<vmem>>, vector<128x128xf32>
    %cst_5 = arith.constant dense<0.000000e+00> : vector<16x128xf32>
    %4 = tpu.matmul %0, %3, %cst_5 {dimension_numbers = #tpu.dot_dimension_numbers<[1], [0], [0], [1], [0, 0, 1, 1], [], []>} : vector<16x128xf32>, vector<128x128xf32>, vector<16x128xf32> -> vector<16x128xf32>
    %c0_6 = arith.constant 0 : index
    %c0_7 = arith.constant 0 : index
    %5 = vector.load %arg3[%c0_6, %c0_7] : memref<1x128xf32, #tpu.memory_space<vmem>>, vector<1x128xf32>
    %6 = vector.broadcast %5 : vector<1x128xf32> to vector<16x128xf32>
    %7 = arith.addf %4, %6 : vector<16x128xf32>
    %cst_8 = arith.constant 5.000000e-01 : f32
    %8 = vector.broadcast %cst_8 : f32 to vector<16x128xf32>
    %9 = arith.mulf %8, %7 : vector<16x128xf32>
    %cst_9 = arith.constant 0.707106769 : f32
    %10 = vector.broadcast %cst_9 : f32 to vector<16x128xf32>
    %11 = arith.mulf %7, %10 : vector<16x128xf32>
    %12 = math.erf %11 : vector<16x128xf32>
    %cst_10 = arith.constant 1.000000e+00 : f32
    %13 = vector.broadcast %cst_10 : f32 to vector<16x128xf32>
    %14 = arith.addf %13, %12 : vector<16x128xf32>
    %15 = arith.mulf %9, %14 : vector<16x128xf32>
    %c0_11 = arith.constant 0 : index
    %c0_12 = arith.constant 0 : index
    %16 = vector.load %arg7[%c0_11, %c0_12] : memref<16x128xf32, #tpu.memory_space<vmem>>, vector<16x128xf32>
    %c0_13 = arith.constant 0 : index
    %c0_14 = arith.constant 0 : index
    %17 = vector.load %arg4[%c0_13, %c0_14] : memref<128x128xf32, #tpu.memory_space<vmem>>, vector<128x128xf32>
    %cst_15 = arith.constant dense<0.000000e+00> : vector<16x128xf32>
    %18 = tpu.matmul %15, %17, %cst_15 {dimension_numbers = #tpu.dot_dimension_numbers<[1], [0], [0], [1], [0, 0, 1, 1], [], []>} : vector<16x128xf32>, vector<128x128xf32>, vector<16x128xf32> -> vector<16x128xf32>
    %19 = arith.addf %16, %18 : vector<16x128xf32>
    %c0_16 = arith.constant 0 : index
    %c0_17 = arith.constant 0 : index
    %20 = vector.load %arg7[%c0_16, %c0_17] : memref<16x128xf32, #tpu.memory_space<vmem>>, vector<16x128xf32>
    tpu.vector_store %arg7[%c0_16, %c0_17], %19 {strides = array<i32>} : memref<16x128xf32, #tpu.memory_space<vmem>>, vector<16x128xf32>,
    %c0_18 = arith.constant 0 : index
    %c0_19 = arith.constant 0 : index
    %21 = vector.load %arg7[%c0_18, %c0_19] : memref<16x128xf32, #tpu.memory_space<vmem>>, vector<16x128xf32>
    %c0_20 = arith.constant 0 : index
    %c0_21 = arith.constant 0 : index
    %22 = vector.load %arg5[%c0_20, %c0_21] : memref<1x128xf32, #tpu.memory_space<vmem>>, vector<1x128xf32>
    %23 = vector.broadcast %22 : vector<1x128xf32> to vector<16x128xf32>
    %24 = arith.addf %21, %23 : vector<16x128xf32>
    %c0_22 = arith.constant 0 : index
    %c0_23 = arith.constant 0 : index
    %25 = vector.load %arg6[%c0_22, %c0_23] : memref<16x128xf32, #tpu.memory_space<vmem>>, vector<16x128xf32>
    tpu.vector_store %arg6[%c0_22, %c0_23], %24 {strides = array<i32>} : memref<16x128xf32, #tpu.memory_space<vmem>>, vector<16x128xf32>,
    return
  }
  func.func @transform_0(%arg0: i32) -> (i32, i32) {
    %c0_i32 = arith.constant 0 : i32
    %c0_i32_0 = arith.constant 0 : i32
    return %arg0, %c0_i32 : i32, i32
  }
  func.func @transform_1(%arg0: i32) -> (i32, i32) {
    %c0_i32 = arith.constant 0 : i32
    %c0_i32_0 = arith.constant 0 : i32
    %c0_i32_1 = arith.constant 0 : i32
    return %c0_i32, %c0_i32_0 : i32, i32
  }
  func.func @transform_2(%arg0: i32) -> (i32, i32) {
    %c0_i32 = arith.constant 0 : i32
    %c0_i32_0 = arith.constant 0 : i32
    %c0_i32_1 = arith.constant 0 : i32
    return %c0_i32, %c0_i32_0 : i32, i32
  }
  func.func @transform_3(%arg0: i32) -> (i32, i32) {
    %c0_i32 = arith.constant 0 : i32
    %c0_i32_0 = arith.constant 0 : i32
    %c0_i32_1 = arith.constant 0 : i32
    return %c0_i32, %c0_i32_0 : i32, i32
  }
  func.func @transform_4(%arg0: i32) -> (i32, i32) {
    %c0_i32 = arith.constant 0 : i32
    %c0_i32_0 = arith.constant 0 : i32
    %c0_i32_1 = arith.constant 0 : i32
    return %c0_i32, %c0_i32_0 : i32, i32
  }
  func.func @transform_5(%arg0: i32) -> (i32, i32) {
    %c0_i32 = arith.constant 0 : i32
    %c0_i32_0 = arith.constant 0 : i32
    return %arg0, %c0_i32 : i32, i32
  }
}

</mosaic_0001>

<llo_original>
// kernel: tpu_custom_call.1
$region0: #{tpu_custom_call.1}
  #allocation0 [shape = 'u32[]', space=smem, size = 0x4, offset = 0x4, fixed_abs, tag = 'smem constant byte address 0x4 - core index']
  #allocation1 [shape = 'u32[144,128]{1,0:T(1,128)}', space=vmem, size = 0x12000, scoped, tag = 'internal scratch']
  #allocation2 [shape = 'f32[16,128]{1,0:T(8,128)}', space=vmem, size = 0x2000, scoped, tag = 'scratch operand']
  %s0 = inlined_call_operand.hbm [shape: f32[16,128], index: 0, kind: input, shape index: {}]
  %s1 = inlined_call_operand.hbm [shape: f32[128,128], index: 1, kind: input, shape index: {}]
  %s2 = inlined_call_operand.vmem [shape: f32[1,128], index: 2, kind: input, shape index: {}]
  %s3 = inlined_call_operand.hbm [shape: f32[128,128], index: 3, kind: input, shape index: {}]
  %s4 = inlined_call_operand.vmem [shape: f32[1,128], index: 4, kind: input, shape index: {}]
  %s5 = inlined_call_operand.hbm [shape: f32[16,128], index: 5, kind: output, shape index: {}]
  %s6 = sld [smem:[#allocation0]]
  $region42: #{tpu_custom_call.1} parent=0
    _
  %s8 = ssub.s32 1, %s6
  %s9 = scalar_select 0, %s8, %s6
  $region1: #{tpu_custom_call.1} parent=0
    #allocation3 [shape = 'u8[8192]{0}', space=vmem, size = 0x2000, scoped, tag = 'input window, operand 0, single buffered']
    #allocation4 [shape = 's32[1]{0}', space=sflag, size = 0x4, scoped, tag = 'scoped memory for tpu_custom_call.1']
    #allocation5 [shape = 's32[1]{0}', space=sflag, size = 0x4, scoped, tag = 'scoped memory for tpu_custom_call.1']
    #allocation6 [shape = 'u8[65536]{0}', space=vmem, size = 0x10000, scoped, tag = 'input window, operand 1, single buffered']
    #allocation7 [shape = 's32[1]{0}', space=sflag, size = 0x4, scoped, tag = 'scoped memory for tpu_custom_call.1']
    #allocation8 [shape = 'u8[65536]{0}', space=vmem, size = 0x10000, scoped, tag = 'input window, operand 3, single buffered']
    #allocation9 [shape = 'u8[8192]{0}', space=vmem, size = 0x2000, scoped, tag = 'output window, operand 0, single buffered']
    %10 = vsyncpa [#allocation4], 0
    %11 = vsyncpa [#allocation7], 0
    %12 = vsyncpa [#allocation5], 0
    // Predicated region
    $region2: #{tpu_custom_call.1} parent=1 // pred_check
      _
    $region3: #{tpu_custom_call.1} parent=1 // pred_check_branch
      %14 = sbr.rel (0) target = $region5
    $region4: #{tpu_custom_call.1} parent=1 // pred_region
      %s16 = ssub.s32 256, 256
      %17 = vsyncadd [#allocation4], %s16
      %s18 = sshll.u32 [#allocation3], 4
      %s19 = int_to_ptr.vmem [resolvable:$true] %s18
      %24 = dma.hbm_to_vmem [thread:$0]  %s0, 256, %s19, [#allocation4], 128, 128, 8
    $region5: #{tpu_custom_call.1} parent=1 // pred_fallthru
      _
    // Predicated region
    $region6: #{tpu_custom_call.1} parent=1 // pred_check
      _
    $region7: #{tpu_custom_call.1} parent=1 // pred_check_branch
      %26 = sbr.rel (0) target = $region9
    $region8: #{tpu_custom_call.1} parent=1 // pred_region
      %s28 = ssub.s32 2048, 2048
      %29 = vsyncadd [#allocation7], %s28
      %s30 = sshll.u32 [#allocation6], 4
      %s31 = int_to_ptr.vmem [resolvable:$true] %s30
      %36 = dma.hbm_to_vmem [thread:$0]  %s1, 2048, %s31, [#allocation7], 128, 128, 8
    $region9: #{tpu_custom_call.1} parent=1 // pred_fallthru
      _
    // Predicated region
    $region10: #{tpu_custom_call.1} parent=1 // pred_check
      _
    $region11: #{tpu_custom_call.1} parent=1 // pred_check_branch
      %38 = sbr.rel (0) target = $region13
    $region12: #{tpu_custom_call.1} parent=1 // pred_region
      _
    $region13: #{tpu_custom_call.1} parent=1 // pred_fallthru
      _
    // Predicated region
    $region14: #{tpu_custom_call.1} parent=1 // pred_check
      _
    $region15: #{tpu_custom_call.1} parent=1 // pred_check_branch
      %40 = sbr.rel (0) target = $region17
    $region16: #{tpu_custom_call.1} parent=1 // pred_region
      %s42 = ssub.s32 2048, 2048
      %43 = vsyncadd [#allocation7], %s42
      %s44 = sshll.u32 [#allocation8], 4
      %s45 = int_to_ptr.vmem [resolvable:$true] %s44
      %50 = dma.hbm_to_vmem [thread:$0]  %s3, 2048, %s45, [#allocation7], 128, 128, 8
    $region17: #{tpu_custom_call.1} parent=1 // pred_fallthru
      _
    // Predicated region
    $region18: #{tpu_custom_call.1} parent=1 // pred_check
      _
    $region19: #{tpu_custom_call.1} parent=1 // pred_check_branch
      %52 = sbr.rel (0) target = $region21
    $region20: #{tpu_custom_call.1} parent=1 // pred_region
      _
    $region21: #{tpu_custom_call.1} parent=1 // pred_fallthru
      _
    // Predicated region
    $region22: #{tpu_custom_call.1} parent=1 // pred_check
      _
    $region23: #{tpu_custom_call.1} parent=1 // pred_check_branch
      %54 = sbr.rel (0) target = $region25
    $region24: #{tpu_custom_call.1} parent=1 // pred_region
      %55 = dma.done [#allocation4], 256
    $region25: #{tpu_custom_call.1} parent=1 // pred_fallthru
      _
    // Predicated region
    $region26: #{tpu_custom_call.1} parent=1 // pred_check
      _
    $region27: #{tpu_custom_call.1} parent=1 // pred_check_branch
      %57 = sbr.rel (0) target = $region29
    $region28: #{tpu_custom_call.1} parent=1 // pred_region
      %58 = dma.done [#allocation7], 2048
    $region29: #{tpu_custom_call.1} parent=1 // pred_fallthru
      _
    // Predicated region
    $region30: #{tpu_custom_call.1} parent=1 // pred_check
      _
    $region31: #{tpu_custom_call.1} parent=1 // pred_check_branch
      %60 = sbr.rel (0) target = $region33
    $region32: #{tpu_custom_call.1} parent=1 // pred_region
      %61 = dma.done [#allocation7], 2048
    $region33: #{tpu_custom_call.1} parent=1 // pred_fallthru
      _
    %v62 = vld [vmem:[#allocation3] sm:$0xff]
    %v63 = vld [vmem:[#allocation3 + $0x8] sm:$0xff]
    %64 = vst [vmem:[#allocation2] sm:$0xff] 0.0
    %65 = vst [vmem:[#allocation2 + $0x8] sm:$0xff] 0.0
    %v66 = vld [vmem:[#allocation6] sm:$0xff]
    %v67 = vld [vmem:[#allocation6 + $0x8] sm:$0xff]
    %v68 = vld [vmem:[#allocation6 + $0x10] sm:$0xff]
    %v69 = vld [vmem:[#allocation6 + $0x18] sm:$0xff]
    %v70 = vld [vmem:[#allocation6 + $0x20] sm:$0xff]
    %v71 = vld [vmem:[#allocation6 + $0x28] sm:$0xff]
    %v72 = vld [vmem:[#allocation6 + $0x30] sm:$0xff]
    %v73 = vld [vmem:[#allocation6 + $0x38] sm:$0xff]
    %v74 = vld [vmem:[#allocation6 + $0x40] sm:$0xff]
    %v75 = vld [vmem:[#allocation6 + $0x48] sm:$0xff]
    %v76 = vld [vmem:[#allocation6 + $0x50] sm:$0xff]
    %v77 = vld [vmem:[#allocation6 + $0x58] sm:$0xff]
    %v78 = vld [vmem:[#allocation6 + $0x60] sm:$0xff]
    %v79 = vld [vmem:[#allocation6 + $0x68] sm:$0xff]
    %v80 = vld [vmem:[#allocation6 + $0x70] sm:$0xff]
    %v81 = vld [vmem:[#allocation6 + $0x78] sm:$0xff]
    %v82 = vld [vmem:[%s2] sm:$0x1]
    %v84 = vlaneseq
    %v85 = vshrl.u32 %v84, 7
    %v86 = vsub.s32 0, %v85
    %v87 = vrot.slane %v82, %v86
    %89 = vmatprep.subr.mxu0 0.0
    %90 = vmatpush1.msra.mxu0 %v66
    %91 = vmatprep.subr.mxu0 0.0
    %92 = vmatpush1.msra.mxu0 %v67
    %93 = vmatprep.subr.mxu0 0.0
    %94 = vmatpush1.msra.mxu0 %v68
    %95 = vmatprep.subr.mxu0 0.0
    %96 = vmatpush1.msra.mxu0 %v69
    %97 = vmatprep.subr.mxu0 0.0
    %98 = vmatpush1.msra.mxu0 %v70
    %99 = vmatprep.subr.mxu0 0.0
    %100 = vmatpush1.msra.mxu0 %v71
    %101 = vmatprep.subr.mxu0 0.0
    %102 = vmatpush1.msra.mxu0 %v72
    %103 = vmatprep.subr.mxu0 0.0
    %104 = vmatpush1.msra.mxu0 %v73
    %105 = vmatprep.subr.mxu0 0.0
    %106 = vmatpush1.msra.mxu0 %v74
    %107 = vmatprep.subr.mxu0 0.0
    %108 = vmatpush1.msra.mxu0 %v75
    %109 = vmatprep.subr.mxu0 0.0
    %110 = vmatpush1.msra.mxu0 %v76
    %111 = vmatprep.subr.mxu0 0.0
    %112 = vmatpush1.msra.mxu0 %v77
    %113 = vmatprep.subr.mxu0 0.0
    %114 = vmatpush1.msra.mxu0 %v78
    %115 = vmatprep.subr.mxu0 0.0
    %116 = vmatpush1.msra.mxu0 %v79
    %117 = vmatprep.subr.mxu0 0.0
    %118 = vmatpush1.msra.mxu0 %v80
    %119 = vmatprep.subr.mxu0 0.0
    %120 = vmatpush1.msra.mxu0 %v81
    %121 = vmatprep.subr.mxu0 0.0
    %122 = vmatpush1.msra.mxu0 0.0
    %123 = vmatprep.subr.mxu0 0.0
    %124 = vmatpush1.msra.mxu0 0.0
    %125 = vmatprep.subr.mxu0 0.0
    %126 = vmatpush1.msra.mxu0 0.0
    %127 = vmatprep.subr.mxu0 0.0
    %128 = vmatpush1.msra.mxu0 0.0
    %129 = vmatprep.subr.mxu0 0.0
    %130 = vmatpush1.msra.mxu0 0.0
    %131 = vmatprep.subr.mxu0 0.0
    %132 = vmatpush1.msra.mxu0 0.0
    %133 = vmatprep.subr.mxu0 0.0
    %134 = vmatpush1.msra.mxu0 0.0
    %135 = vmatprep.subr.mxu0 0.0
    %136 = vmatpush1.msra.mxu0 0.0
    %137 = vmatprep.subr.mxu0 0.0
    %138 = vmatpush1.msra.mxu0 0.0
    %139 = vmatprep.subr.mxu0 0.0
    %140 = vmatpush1.msra.mxu0 0.0
    %141 = vmatprep.subr.mxu0 0.0
    %142 = vmatpush1.msra.mxu0 0.0
    %143 = vmatprep.subr.mxu0 0.0
    %144 = vmatpush1.msra.mxu0 0.0
    %145 = vmatprep.subr.mxu0 0.0
    %146 = vmatpush1.msra.mxu0 0.0
    %147 = vmatprep.subr.mxu0 0.0
    %148 = vmatpush1.msra.mxu0 0.0
    %149 = vmatprep.subr.mxu0 0.0
    %150 = vmatpush1.msra.mxu0 0.0
    %151 = vmatprep.subr.mxu0 0.0
    %152 = vmatpush1.msra.mxu0 0.0
    %153 = vmatprep.mubr.f32.mxu0 0.0
    %154 = vmatmul.mubr.f32.gmra.mrb[0].mxu0 %v62
    %v155 = vpop.f32.mrb[0].mxu0
    %v156 = vadd.f32 %v87, %v155
    %v157 = vpop.f32.mrb[0].mxu0
    %158 = vmatprep.mubr.f32.mxu0 0.0
    %159 = vmatmul.mubr.f32.gmra.mrb[0].mxu0 %v63
    %v160 = vpop.f32.mrb[0].mxu0
    %v161 = vadd.f32 %v87, %v160
    %v162 = vpop.f32.mrb[0].mxu0
    %163 = vdwg.mxu0
    %v164 = vmul.f32 %v156, 0.5
    %v165 = vmul.f32 %v161, 0.5
    %v166 = vmul.f32 %v156, 0.70710677
    %v167 = vmul.f32 %v161, 0.70710677
    %v168 = verf.f32.pop %v166
    %v169 = verf.f32.pop %v167
    %v170 = vadd.f32 %v168, 1.0
    %v171 = vadd.f32 %v169, 1.0
    %v172 = vmul.f32 %v164, %v170
    %v173 = vmul.f32 %v165, %v171
    %v174 = vld [vmem:[#allocation2] sm:$0xff]
    %v175 = vld [vmem:[#allocation2 + $0x8] sm:$0xff]
    %v176 = vld [vmem:[#allocation8] sm:$0xff]
    %v177 = vld [vmem:[#allocation8 + $0x8] sm:$0xff]
    %v178 = vld [vmem:[#allocation8 + $0x10] sm:$0xff]
    %v179 = vld [vmem:[#allocation8 + $0x18] sm:$0xff]
    %v180 = vld [vmem:[#allocation8 + $0x20] sm:$0xff]
    %v181 = vld [vmem:[#allocation8 + $0x28] sm:$0xff]
    %v182 = vld [vmem:[#allocation8 + $0x30] sm:$0xff]
    %v183 = vld [vmem:[#allocation8 + $0x38] sm:$0xff]
    %v184 = vld [vmem:[#allocation8 + $0x40] sm:$0xff]
    %v185 = vld [vmem:[#allocation8 + $0x48] sm:$0xff]
    %v186 = vld [vmem:[#allocation8 + $0x50] sm:$0xff]
    %v187 = vld [vmem:[#allocation8 + $0x58] sm:$0xff]
    %v188 = vld [vmem:[#allocation8 + $0x60] sm:$0xff]
    %v189 = vld [vmem:[#allocation8 + $0x68] sm:$0xff]
    %v190 = vld [vmem:[#allocation8 + $0x70] sm:$0xff]
    %v191 = vld [vmem:[#allocation8 + $0x78] sm:$0xff]
    %192 = vmatprep.subr.mxu0 0.0
    %193 = vmatpush1.msra.mxu0 %v176
    %194 = vmatprep.subr.mxu0 0.0
    %195 = vmatpush1.msra.mxu0 %v177
    %196 = vmatprep.subr.mxu0 0.0
    %197 = vmatpush1.msra.mxu0 %v178
    %198 = vmatprep.subr.mxu0 0.0
    %199 = vmatpush1.msra.mxu0 %v179
    %200 = vmatprep.subr.mxu0 0.0
    %201 = vmatpush1.msra.mxu0 %v180
    %202 = vmatprep.subr.mxu0 0.0
    %203 = vmatpush1.msra.mxu0 %v181
    %204 = vmatprep.subr.mxu0 0.0
    %205 = vmatpush1.msra.mxu0 %v182
    %206 = vmatprep.subr.mxu0 0.0
    %207 = vmatpush1.msra.mxu0 %v183
    %208 = vmatprep.subr.mxu0 0.0
    %209 = vmatpush1.msra.mxu0 %v184
    %210 = vmatprep.subr.mxu0 0.0
    %211 = vmatpush1.msra.mxu0 %v185
    %212 = vmatprep.subr.mxu0 0.0
    %213 = vmatpush1.msra.mxu0 %v186
    %214 = vmatprep.subr.mxu0 0.0
    %215 = vmatpush1.msra.mxu0 %v187
    %216 = vmatprep.subr.mxu0 0.0
    %217 = vmatpush1.msra.mxu0 %v188
    %218 = vmatprep.subr.mxu0 0.0
    %219 = vmatpush1.msra.mxu0 %v189
    %220 = vmatprep.subr.mxu0 0.0
    %221 = vmatpush1.msra.mxu0 %v190
    %222 = vmatprep.subr.mxu0 0.0
    %223 = vmatpush1.msra.mxu0 %v191
    %224 = vmatprep.subr.mxu0 0.0
    %225 = vmatpush1.msra.mxu0 0.0
    %226 = vmatprep.subr.mxu0 0.0
    %227 = vmatpush1.msra.mxu0 0.0
    %228 = vmatprep.subr.mxu0 0.0
    %229 = vmatpush1.msra.mxu0 0.0
    %230 = vmatprep.subr.mxu0 0.0
    %231 = vmatpush1.msra.mxu0 0.0
    %232 = vmatprep.subr.mxu0 0.0
    %233 = vmatpush1.msra.mxu0 0.0
    %234 = vmatprep.subr.mxu0 0.0
    %235 = vmatpush1.msra.mxu0 0.0
    %236 = vmatprep.subr.mxu0 0.0
    %237 = vmatpush1.msra.mxu0 0.0
    %238 = vmatprep.subr.mxu0 0.0
    %239 = vmatpush1.msra.mxu0 0.0
    %240 = vmatprep.subr.mxu0 0.0
    %241 = vmatpush1.msra.mxu0 0.0
    %242 = vmatprep.subr.mxu0 0.0
    %243 = vmatpush1.msra.mxu0 0.0
    %244 = vmatprep.subr.mxu0 0.0
    %245 = vmatpush1.msra.mxu0 0.0
    %246 = vmatprep.subr.mxu0 0.0
    %247 = vmatpush1.msra.mxu0 0.0
    %248 = vmatprep.subr.mxu0 0.0
    %249 = vmatpush1.msra.mxu0 0.0
    %250 = vmatprep.subr.mxu0 0.0
    %251 = vmatpush1.msra.mxu0 0.0
    %252 = vmatprep.subr.mxu0 0.0
    %253 = vmatpush1.msra.mxu0 0.0
    %254 = vmatprep.subr.mxu0 0.0
    %255 = vmatpush1.msra.mxu0 0.0
    %256 = vmatprep.mubr.f32.mxu0 0.0
    %257 = vmatmul.mubr.f32.gmra.mrb[0].mxu0 %v172
    %v258 = vpop.f32.mrb[0].mxu0
    %v259 = vadd.f32 0.0, %v258
    %v260 = vpop.f32.mrb[0].mxu0
    %261 = vmatprep.mubr.f32.mxu0 0.0
    %262 = vmatmul.mubr.f32.gmra.mrb[0].mxu0 %v173
    %v263 = vpop.f32.mrb[0].mxu0
    %v264 = vadd.f32 0.0, %v263
    %v265 = vpop.f32.mrb[0].mxu0
    %266 = vdwg.mxu0
    %v267 = vadd.f32 %v174, %v259
    %v268 = vadd.f32 %v175, %v264
    %269 = vst [vmem:[#allocation2] sm:$0xff] %v267
    %270 = vst [vmem:[#allocation2 + $0x8] sm:$0xff] %v268
    %v271 = vld [vmem:[#allocation2] sm:$0xff]
    %v272 = vld [vmem:[#allocation2 + $0x8] sm:$0xff]
    %v273 = vld [vmem:[%s4] sm:$0x1]
    %v275 = vlaneseq
    %v276 = vshrl.u32 %v275, 7
    %v277 = vsub.s32 0, %v276
    %v278 = vrot.slane %v273, %v277
    %v280 = vadd.f32 %v271, %v278
    %v281 = vadd.f32 %v272, %v278
    %282 = vst [vmem:[#allocation9] sm:$0xff] %v280
    %283 = vst [vmem:[#allocation9 + $0x8] sm:$0xff] %v281
    // Predicated region
    $region34: #{tpu_custom_call.1} parent=1 // pred_check
      _
    $region35: #{tpu_custom_call.1} parent=1 // pred_check_branch
      %285 = sbr.rel (0) target = $region37
    $region36: #{tpu_custom_call.1} parent=1 // pred_region
      %s287 = ssub.s32 256, 256
      %288 = vsyncadd [#allocation5], %s287
      %s289 = sshll.u32 [#allocation9], 4
      %s290 = int_to_ptr.vmem [resolvable:$true] %s289
      %295 = dma.vmem_to_hbm [thread:$0]  %s290, 256, %s5, [#allocation5], 128, 128, 8
    $region37: #{tpu_custom_call.1} parent=1 // pred_fallthru
      _
    // Predicated region
    $region38: #{tpu_custom_call.1} parent=1 // pred_check
      _
    $region39: #{tpu_custom_call.1} parent=1 // pred_check_branch
      %297 = sbr.rel (0) target = $region41
    $region40: #{tpu_custom_call.1} parent=1 // pred_region
      %298 = dma.done [#allocation5], 256
    $region41: #{tpu_custom_call.1} parent=1 // pred_fallthru
      _
    %299 = vsyncpa [#allocation4], 1
    %300 = vsyncpa [#allocation7], 1
    %301 = vsyncpa [#allocation5], 1

</llo_original>
